<compile_context>
chip_gen: v5e
topology: v5e:2x2
jax: 0.10.0
libtpu: 0.0.40
codegen_flags: <defaults>
</compile_context>

<pallas_src>
import math

import jax
import jax.numpy as jnp
from jax import lax
from jax.experimental import pallas as pl
from jax.experimental.pallas import tpu as pltpu


def _round_up(a, m):
    return ((a + m - 1) // m) * m


def _probe_kernel(x_ref, w_ref, o_ref, acc_ref):
    # x_ref: (BM, DK), w_ref: (2, DK), o_ref: (BM, 2), acc_ref: (BM, 2) f32
    k = pl.program_id(1)

    @pl.when(k == 0)
    def _():
        acc_ref[...] = jnp.zeros_like(acc_ref)

    # Contract on the last dim of both operands -> no in-kernel transpose of W.
    acc_ref[...] += lax.dot_general(
        x_ref[...],
        w_ref[...],
        dimension_numbers=(((1,), (1,)), ((), ())),
        preferred_element_type=jnp.float32,
    )

    @pl.when(k == pl.num_programs(1) - 1)
    def _():
        o_ref[...] = acc_ref[...].astype(o_ref.dtype)


def _pick_vmem_limit():
    """Generation-aware scoped-VMEM budget (v5e/v6e: ~96 MiB, v7x: ~44 MiB)."""
    phys = None
    try:
        info = pltpu.get_tpu_info()
        phys = getattr(info, "vmem_capacity_bytes", None)
    except Exception:
        phys = None
    if not phys:
        phys = 64 * 1024 * 1024          # conservative default: v7x per-TC VMEM
    lim = min(int(phys) - 20 * 1024 * 1024, 96 * 1024 * 1024)
    return int(max(lim, 24 * 1024 * 1024))


def probe_forward(x, weight, *, stream_dtype=None, block_k=None,
                  target_tile_bytes=4 * 1024 * 1024, vmem_limit_bytes=None):
    """Probe.forward: x (B, S, H), weight (2, S*H) -> (B, 2) float32."""
    B = x.shape[0]
    D = math.prod(x.shape[1:])
    x_flat = x.reshape(B, D)                      # == flatten(start_dim=1)

    if stream_dtype is not None:                  # optional bf16 streaming
        x_flat = x_flat.astype(stream_dtype)
        weight = weight.astype(stream_dtype)

    itemsize = jnp.dtype(x_flat.dtype).itemsize
    sub = {4: 8, 2: 16, 1: 32}[itemsize]          # sublane packing multiple

    if vmem_limit_bytes is None:
        vmem_limit_bytes = _pick_vmem_limit()
    # Budget ~55% of scoped VMEM for the double-buffered x tile; the rest is
    # headroom for the (double-buffered) weight/output blocks, the accumulator
    # scratch and compiler scratch.
    x_budget = int(vmem_limit_bytes * 0.55)

    # ---- contraction tile: split K only when a full-D row squeezes BM -------
    if block_k is not None:
        dk = int(block_k)
    else:
        rows_full_d = x_budget // (2 * D * itemsize)
        if rows_full_d >= 256:
            dk = D                                 # whole row per tile (nk == 1)
        else:
            dk = x_budget // (2 * 512 * itemsize)  # aim for ~512-row x tiles
            dk = max(128, (dk // 128) * 128)
            dk = min(dk, _round_up(D, 128))
    d_pad = _round_up(D, dk)

    # ---- batch tile: ~target_tile_bytes per step, VMEM-capped, >=2 steps ----
    bm = max(sub, target_tile_bytes // (dk * itemsize))
    bm = min(bm, max(sub, x_budget // (2 * dk * itemsize)))
    min_steps = 2                                  # let both v7x TCs run
    if B >= 2 * min_steps * sub:
        bm = min(bm, _round_up(pl.cdiv(B, min_steps), sub))
    bm = min(bm, _round_up(B, sub))
    bm = max(sub, (bm // sub) * sub)
    b_pad = _round_up(B, bm)

    # ---- zero-pad (padded rows/cols contribute nothing to the dot) ----------
    if b_pad != B or d_pad != D:
        x_flat = jnp.pad(x_flat, ((0, b_pad - B), (0, d_pad - D)))
    if d_pad != D:
        weight = jnp.pad(weight, ((0, 0), (0, d_pad - D)))

    nb, nk = b_pad // bm, d_pad // dk

    out = pl.pallas_call(
        _probe_kernel,
        out_shape=jax.ShapeDtypeStruct((b_pad, 2), jnp.float32),
        grid=(nb, nk),
        in_specs=[
            # x streams per (batch, K) tile (double-buffered by Pallas).
            pl.BlockSpec((bm, dk), lambda i, k: (i, k)),
            # weight: constant batch index; fully resident across the grid
            # when nk == 1, streamed per-K otherwise (tiny vs. x traffic).
            pl.BlockSpec((2, dk), lambda i, k: (0, k)),
        ],
        out_specs=pl.BlockSpec((bm, 2), lambda i, k: (i, 0)),
        scratch_shapes=[pltpu.VMEM((bm, 2), jnp.float32)],
        compiler_params=pltpu.CompilerParams(
            dimension_semantics=("parallel", "arbitrary"),
            vmem_limit_bytes=int(vmem_limit_bytes),
        ),
        cost_estimate=pl.CostEstimate(
            flops=4 * b_pad * d_pad,               # b_pad*2 outputs, 2*d_pad flops each
            transcendentals=0,
            bytes_accessed=(b_pad * d_pad + 2 * d_pad * nb) * itemsize + 8 * b_pad,
        ),
    )(x_flat, weight)

    return out[:B]


if __name__ == "__main__":
    # Small shapes consistent with the module: in_shape = (seq=8, hidden=32).
    B, S, H = 2, 8, 32
    D = S * H

    key = jax.random.PRNGKey(0)
    kx, kw, kx2 = jax.random.split(key, 3)

    x = jax.random.normal(kx, (B, S, H), dtype=jnp.float32)
    # Deterministic init mimicking nn.Linear default (uniform in +-1/sqrt(D)).
    bound = 1.0 / math.sqrt(D)
    weight = jax.random.uniform(kw, (2, D), dtype=jnp.float32,
                                minval=-bound, maxval=bound)

    out = probe_forward(x, weight)
    jax.block_until_ready(out)

    ref = x.reshape(B, D) @ weight.T
    assert out.shape == (B, 2)
    assert jnp.allclose(out, ref, atol=1e-5, rtol=1e-5)

    # Extra coverage: (a) multi-step batch grid with padding, (b) forced K
    # split exercising the accumulator / pl.when path.
    B2 = 37
    x2 = jax.random.normal(kx2, (B2, S, H), dtype=jnp.float32)
    ref2 = x2.reshape(B2, D) @ weight.T
    out2 = probe_forward(x2, weight)
    out3 = probe_forward(x2, weight, block_k=128)
    jax.block_until_ready((out2, out3))
    assert jnp.allclose(out2, ref2, atol=1e-5, rtol=1e-5)
    assert jnp.allclose(out3, ref2, atol=1e-5, rtol=1e-5)

    print("KERNEL_OK")
</pallas_src>

<mosaic_0001>
module attributes {stable_mosaic.version = 11 : i64} {
  func.func @_probe_kernel(%arg0: i32, %arg1: i32, %arg2: memref<8x256xf32, #tpu.memory_space<vmem>>, %arg3: memref<2x256xf32, #tpu.memory_space<vmem>>, %arg4: memref<8x2xf32, #tpu.memory_space<vmem>>, %arg5: memref<8x2xf32, #tpu.memory_space<vmem>>) attributes {dimension_semantics = [#tpu.dimension_semantics<parallel>, #tpu.dimension_semantics<arbitrary>], iteration_bounds = array<i64: 1, 1>, scalar_prefetch = 0 : i64, scratch_operands = 1 : i64, tpu.core_type = #tpu.core_type<tc>, window_params = [{transform_indices = @transform_0, window_bounds = array<i64: 8, 256>}, {transform_indices = @transform_1, window_bounds = array<i64: 2, 256>}, {transform_indices = @transform_2, window_bounds = array<i64: 8, 2>}]} {
    %c0_i32 = arith.constant 0 : i32
    %0 = arith.cmpi eq, %arg1, %c0_i32 : i32
    %1 = arith.extui %0 : i1 to i32
    %c0_i32_0 = arith.constant 0 : i32
    %2 = arith.cmpi ne, %1, %c0_i32_0 : i32
    scf.if %2 {
      %cst_10 = arith.constant 0.000000e+00 : f32
      %12 = vector.broadcast %cst_10 : f32 to vector<8x2xf32>
      %c0_11 = arith.constant 0 : index
      %c0_12 = arith.constant 0 : index
      %13 = vector.load %arg5[%c0_11, %c0_12] : memref<8x2xf32, #tpu.memory_space<vmem>>, vector<8x2xf32>
      tpu.vector_store %arg5[%c0_11, %c0_12], %12 {strides = array<i32>} : memref<8x2xf32, #tpu.memory_space<vmem>>, vector<8x2xf32>,
    } else {
    }
    %c0 = arith.constant 0 : index
    %c0_1 = arith.constant 0 : index
    %3 = vector.load %arg5[%c0, %c0_1] : memref<8x2xf32, #tpu.memory_space<vmem>>, vector<8x2xf32>
    %c0_2 = arith.constant 0 : index
    %c0_3 = arith.constant 0 : index
    %4 = vector.load %arg2[%c0_2, %c0_3] : memref<8x256xf32, #tpu.memory_space<vmem>>, vector<8x256xf32>
    %c0_4 = arith.constant 0 : index
    %c0_5 = arith.constant 0 : index
    %5 = vector.load %arg3[%c0_4, %c0_5] : memref<2x256xf32, #tpu.memory_space<vmem>>, vector<2x256xf32>
    %cst = arith.constant dense<0.000000e+00> : vector<8x2xf32>
    %6 = tpu.matmul %4, %5, %cst {dimension_numbers = #tpu.dot_dimension_numbers<[1], [1], [0], [0], [0, 0, 1, 0], [], []>} : vector<8x256xf32>, vector<2x256xf32>, vector<8x2xf32> -> vector<8x2xf32>
    %7 = arith.addf %3, %6 : vector<8x2xf32>
    %c0_6 = arith.constant 0 : index
    %c0_7 = arith.constant 0 : index
    %8 = vector.load %arg5[%c0_6, %c0_7] : memref<8x2xf32, #tpu.memory_space<vmem>>, vector<8x2xf32>
    tpu.vector_store %arg5[%c0_6, %c0_7], %7 {strides = array<i32>} : memref<8x2xf32, #tpu.memory_space<vmem>>, vector<8x2xf32>,
    %c0_i32_8 = arith.constant 0 : i32
    %9 = arith.cmpi eq, %arg1, %c0_i32_8 : i32
    %10 = arith.extui %9 : i1 to i32
    %c0_i32_9 = arith.constant 0 : i32
    %11 = arith.cmpi ne, %10, %c0_i32_9 : i32
    scf.if %11 {
      %c0_10 = arith.constant 0 : index
      %c0_11 = arith.constant 0 : index
      %12 = vector.load %arg5[%c0_10, %c0_11] : memref<8x2xf32, #tpu.memory_space<vmem>>, vector<8x2xf32>
      %c0_12 = arith.constant 0 : index
      %c0_13 = arith.constant 0 : index
      %13 = vector.load %arg4[%c0_12, %c0_13] : memref<8x2xf32, #tpu.memory_space<vmem>>, vector<8x2xf32>
      tpu.vector_store %arg4[%c0_12, %c0_13], %12 {strides = array<i32>} : memref<8x2xf32, #tpu.memory_space<vmem>>, vector<8x2xf32>,
    } else {
    }
    return
  }
  func.func @transform_0(%arg0: i32, %arg1: i32) -> (i32, i32) {
    %c0_i32 = arith.constant 0 : i32
    return %arg0, %arg1 : i32, i32
  }
  func.func @transform_1(%arg0: i32, %arg1: i32) -> (i32, i32) {
    %c0_i32 = arith.constant 0 : i32
    %c0_i32_0 = arith.constant 0 : i32
    return %c0_i32, %arg1 : i32, i32
  }
  func.func @transform_2(%arg0: i32, %arg1: i32) -> (i32, i32) {
    %c0_i32 = arith.constant 0 : i32
    %c0_i32_0 = arith.constant 0 : i32
    return %arg0, %c0_i32 : i32, i32
  }
}

</mosaic_0001>

<llo_original>
// kernel: tpu_custom_call.1
$region0: #{tpu_custom_call.1}
  #allocation0 [shape = 'u32[]', space=smem, size = 0x4, offset = 0x4, fixed_abs, tag = 'smem constant byte address 0x4 - core index']
  #allocation1 [shape = 'u32[72,128]{1,0:T(1,128)}', space=vmem, size = 0x9000, scoped, tag = 'internal scratch']
  #allocation2 [shape = 'f32[8,2]{1,0:T(8,128)}', space=vmem, size = 0x1000, scoped, tag = 'scratch operand']
  %s0 = inlined_call_operand.hbm [shape: f32[8,256], index: 0, kind: input, shape index: {}]
  %s1 = inlined_call_operand.hbm [shape: f32[2,256], index: 1, kind: input, shape index: {}]
  %s2 = inlined_call_operand.vmem [shape: f32[8,2], index: 2, kind: output, shape index: {}]
  %s3 = sld [smem:[#allocation0]]
  $region34: #{tpu_custom_call.1} parent=0
    _
  %s5 = ssub.s32 1, %s3
  %s6 = scalar_select 0, %s5, %s3
  $region1: #{tpu_custom_call.1} parent=0
    #allocation3 [shape = 'u8[8192]{0}', space=vmem, size = 0x2000, scoped, tag = 'input window, operand 0, single buffered']
    #allocation4 [shape = 's32[1]{0}', space=sflag, size = 0x4, scoped, tag = 'scoped memory for tpu_custom_call.1']
    #allocation5 [shape = 'u8[2048]{0}', space=vmem, size = 0x800, scoped, tag = 'input window, operand 1, single buffered']
    #allocation6 [shape = 's32[1]{0}', space=sflag, size = 0x4, scoped, tag = 'scoped memory for tpu_custom_call.1']
    %7 = vsyncpa [#allocation4], 0
    %8 = vsyncpa [#allocation6], 0
    // Predicated region
    $region2: #{tpu_custom_call.1} parent=1 // pred_check
      _
    $region3: #{tpu_custom_call.1} parent=1 // pred_check_branch
      %10 = sbr.rel (0) target = $region5
    $region4: #{tpu_custom_call.1} parent=1 // pred_region
      %12 = vsyncadd [#allocation4], 0
      %s14 = sshll.u32 %s0, 4
      %s15 = int_to_ptr.hbm [resolvable:$true] %s14
      %s16 = sshll.u32 [#allocation3], 4
      %s17 = int_to_ptr.vmem [resolvable:$true] %s16
      %19 = dma.hbm_to_vmem [thread:$0]  %s15, 256, %s17, [#allocation4]
    $region5: #{tpu_custom_call.1} parent=1 // pred_fallthru
      _
    // Predicated region
    $region6: #{tpu_custom_call.1} parent=1 // pred_check
      _
    $region7: #{tpu_custom_call.1} parent=1 // pred_check_branch
      %21 = sbr.rel (0) target = $region9
    $region8: #{tpu_custom_call.1} parent=1 // pred_region
      %23 = vsyncadd [#allocation6], 0
      %s25 = sshll.u32 %s1, 4
      %s26 = int_to_ptr.hbm [resolvable:$true] %s25
      %s27 = sshll.u32 [#allocation5], 4
      %s28 = int_to_ptr.vmem [resolvable:$true] %s27
      %30 = dma.hbm_to_vmem [thread:$0]  %s26, 64, %s28, [#allocation6]
    $region9: #{tpu_custom_call.1} parent=1 // pred_fallthru
      _
    // Predicated region
    $region10: #{tpu_custom_call.1} parent=1 // pred_check
      _
    $region11: #{tpu_custom_call.1} parent=1 // pred_check_branch
      %32 = sbr.rel (0) target = $region13
    $region12: #{tpu_custom_call.1} parent=1 // pred_region
      %34 = dma.done [#allocation4], 256
    $region13: #{tpu_custom_call.1} parent=1 // pred_fallthru
      _
    // Predicated region
    $region14: #{tpu_custom_call.1} parent=1 // pred_check
      _
    $region15: #{tpu_custom_call.1} parent=1 // pred_check_branch
      %36 = sbr.rel (0) target = $region17
    $region16: #{tpu_custom_call.1} parent=1 // pred_region
      %38 = dma.done [#allocation6], 64
    $region17: #{tpu_custom_call.1} parent=1 // pred_fallthru
      _
    %p39 = scmp.eq.s32.totalorder 0, 0
    // Predicated region
    $region18: #{tpu_custom_call.1} parent=1 // pred_check
      %p40 = pneg %p39
    $region19: #{tpu_custom_call.1} parent=1 // pred_check_branch
      %42 = sbr.rel (%p40) target = $region21
    $region20: #{tpu_custom_call.1} parent=1 // pred_region
      %vm43 = vcmask 15360
      %44 = vst.msk [vmem:[#allocation2] sm:$0xff] %vm43, 0.0
    $region21: #{tpu_custom_call.1} parent=1 // pred_fallthru
      _
    %v45 = vld [vmem:[#allocation2] sm:$0xff]
    %v46 = vld [vmem:[#allocation3] sm:$0xff]
    %v47 = vld [vmem:[#allocation3 + $0x8] sm:$0xff]
    %v48 = vld [vmem:[#allocation5] sm:$0xf]
    %50 = vst [vmem:[#allocation1] ss:$4 sm:$0xff] %v48
    %v51 = vld.sshfl [vmem:[#allocation1] sm:$0xff pattern:$0x73625140]
    %v52 = vld.sshfl [vmem:[#allocation1 + $0x8] sm:$0xff pattern:$0x73625140]
    %55 = vmatpush.xpose.msra.mxu0 0.0
    %56 = vmatpush.xpose.msra.mxu0 0.0
    %57 = vmatpush.xpose.msra.mxu0 0.0
    %58 = vmatpush.xpose.msra.mxu0 0.0
    %59 = vmatpush.xpose.msra.mxu0 0.0
    %60 = vmatpush.xpose.msra.mxu0 0.0
    %61 = vmatpush.xpose.msra.mxu0 0.0
    %62 = vmatpush.xpose.msra.mxu0 0.0
    %63 = vmatpush.xpose.msra.mxu0 0.0
    %64 = vmatpush.xpose.msra.mxu0 0.0
    %65 = vmatpush.xpose.msra.mxu0 0.0
    %66 = vmatpush.xpose.msra.mxu0 0.0
    %67 = vmatpush.xpose.msra.mxu0 0.0
    %68 = vmatpush.xpose.msra.mxu0 0.0
    %69 = vmatpush.xpose.msra.mxu0 0.0
    %70 = vmatpush.xpose.msra.mxu0 %v51
    %71 = vmatmul.f32.gmra.mxu0 %v46
    %v72 = vpop.f32.mrf.mxu0
    %v73 = vadd.f32 0.0, %v72
    %74 = vdwg.mxu0
    %75 = vmatpush.xpose.msra.mxu0 0.0
    %76 = vmatpush.xpose.msra.mxu0 0.0
    %77 = vmatpush.xpose.msra.mxu0 0.0
    %78 = vmatpush.xpose.msra.mxu0 0.0
    %79 = vmatpush.xpose.msra.mxu0 0.0
    %80 = vmatpush.xpose.msra.mxu0 0.0
    %81 = vmatpush.xpose.msra.mxu0 0.0
    %82 = vmatpush.xpose.msra.mxu0 0.0
    %83 = vmatpush.xpose.msra.mxu0 0.0
    %84 = vmatpush.xpose.msra.mxu0 0.0
    %85 = vmatpush.xpose.msra.mxu0 0.0
    %86 = vmatpush.xpose.msra.mxu0 0.0
    %87 = vmatpush.xpose.msra.mxu0 0.0
    %88 = vmatpush.xpose.msra.mxu0 0.0
    %89 = vmatpush.xpose.msra.mxu0 0.0
    %90 = vmatpush.xpose.msra.mxu0 %v52
    %91 = vmatmul.f32.gmra.mxu0 %v47
    %v92 = vpop.f32.mrf.mxu0
    %v93 = vadd.f32 %v73, %v92
    %94 = vdwg.mxu0
    %v95 = vadd.f32 %v45, %v93
    %vm96 = vcmask 15360
    %97 = vst.msk [vmem:[#allocation2] sm:$0xff] %vm96, %v95
    // Predicated region
    $region22: #{tpu_custom_call.1} parent=1 // pred_check
      %p98 = pneg %p39
    $region23: #{tpu_custom_call.1} parent=1 // pred_check_branch
      %100 = sbr.rel (%p98) target = $region25
    $region24: #{tpu_custom_call.1} parent=1 // pred_region
      %v101 = vld [vmem:[#allocation2] sm:$0xff]
      %102 = vst.msk [vmem:[%s2] sm:$0xff] %vm96, %v101
    $region25: #{tpu_custom_call.1} parent=1 // pred_fallthru
      _
    // Predicated region
    $region26: #{tpu_custom_call.1} parent=1 // pred_check
      _
    $region27: #{tpu_custom_call.1} parent=1 // pred_check_branch
      %104 = sbr.rel (0) target = $region29
    $region28: #{tpu_custom_call.1} parent=1 // pred_region
      _
    $region29: #{tpu_custom_call.1} parent=1 // pred_fallthru
      _
    // Predicated region
    $region30: #{tpu_custom_call.1} parent=1 // pred_check
      _
    $region31: #{tpu_custom_call.1} parent=1 // pred_check_branch
      %106 = sbr.rel (0) target = $region33
    $region32: #{tpu_custom_call.1} parent=1 // pred_region
      _
    $region33: #{tpu_custom_call.1} parent=1 // pred_fallthru
      _
    %107 = vsyncpa [#allocation4], 1
    %108 = vsyncpa [#allocation6], 1

</llo_original>
